<compile_context>
chip_gen: v7x
topology: tpu7x:2x2x1
jax: 0.10.0
libtpu: 0.0.40
codegen_flags: <defaults>
</compile_context>

<pallas_src>
import functools
import math

import jax
import jax.numpy as jnp
from jax.experimental import pallas as pl
from jax.experimental.pallas import tpu as pltpu


# --------------------------------------------------------------------------
# Kernels
# --------------------------------------------------------------------------

def _encoder_shared_kernel(nv, x_ref, w_front_ref, b_vf_ref, b_ff_ref,
                           w_r1_ref, b_r1_ref, w_r2_ref, b_r2_ref, o_ref):
    """Shared-rare encoder.  x_ref is block-diagonal [[xv,0],[0,xf]] bf16.

    Rows [0, nv)  : voice path  (front bias b_vf)
    Rows [nv, N)  : face  path  (front bias b_ff)
    Rare layers are shared -> one chain per layer on all (nv+nf) rows.
    """
    n_tot = o_ref.shape[0]

    # Front stage: single MXU chain over the stacked (704, 256) weight.
    h = jnp.dot(x_ref[...], w_front_ref[...],
                preferred_element_type=jnp.float32)
    row = jax.lax.broadcasted_iota(jnp.int32, (n_tot, 1), 0)
    is_voice = row < nv
    h = jnp.maximum(h + jnp.where(is_voice, b_vf_ref[...], b_ff_ref[...]), 0.0)

    # Shared rare stage: both modalities batched through the same weights.
    h2 = jnp.dot(h.astype(jnp.bfloat16), w_r1_ref[...],
                 preferred_element_type=jnp.float32) + b_r1_ref[...]
    h2 = jnp.maximum(h2, 0.0)
    out = jnp.dot(h2.astype(jnp.bfloat16), w_r2_ref[...],
                  preferred_element_type=jnp.float32) + b_r2_ref[...]

    # Single lane-dense (128-wide) writeback; wrapper splits voice/face.
    o_ref[...] = out.astype(o_ref.dtype)


def _encoder_unshared_kernel(nv, x_ref, w_front_ref, b_vf_ref, b_ff_ref,
                             w_r1_ref, b_r1_ref, w_r2_ref, b_r2_ref, o_ref):
    """Non-shared rare layers, still one launch and 3 MXU chains total.

    w_r1_ref = [W_r1v | W_r1f] (256, 512), b_r1_ref = [b_r1v | b_r1f] (1, 512)
    w_r2_ref = [W_r2v | W_r2f] (256, 256), b_r2_ref = [b_r2v | b_r2f] (1, 256)
    The per-modality half of each stacked result is selected with a VPU
    where; cross-modality garbage columns are discarded, never mixed in.
    """
    n_tot = o_ref.shape[0]
    mid = w_r1_ref.shape[0]        # 256
    emb = o_ref.shape[1]           # 128

    h = jnp.dot(x_ref[...], w_front_ref[...],
                preferred_element_type=jnp.float32)
    row = jax.lax.broadcasted_iota(jnp.int32, (n_tot, 1), 0)
    is_voice = row < nv
    h = jnp.maximum(h + jnp.where(is_voice, b_vf_ref[...], b_ff_ref[...]), 0.0)

    # rare layer 1, both modalities in one chain over the (256, 512) stack.
    h2_full = jnp.dot(h.astype(jnp.bfloat16), w_r1_ref[...],
                      preferred_element_type=jnp.float32) + b_r1_ref[...]
    h2_full = jnp.maximum(h2_full, 0.0)
    h2 = jnp.where(is_voice, h2_full[:, :mid], h2_full[:, mid:])   # (N, 256)

    # rare layer 2, one chain over the (256, 256) stack.
    out_full = jnp.dot(h2.astype(jnp.bfloat16), w_r2_ref[...],
                       preferred_element_type=jnp.float32) + b_r2_ref[...]
    out = jnp.where(is_voice, out_full[:, :emb], out_full[:, emb:])

    o_ref[...] = out.astype(o_ref.dtype)


# --------------------------------------------------------------------------
# Wrappers
# --------------------------------------------------------------------------

_VMEM = pltpu.MemorySpace.VMEM


def _vmem_specs(n):
    return [pl.BlockSpec(memory_space=_VMEM) for _ in range(n)]


def _round_up(n, m):
    return ((n + m - 1) // m) * m


def _block_diag_input(xv, xf, nv_p, nf_p):
    """Build the bf16 block-diagonal input [[xv, 0], [0, xf]] with rows
    padded up to sublane multiples (8)."""
    kv, kf = xv.shape[1], xf.shape[1]
    xv = jnp.pad(xv, ((0, nv_p - xv.shape[0]), (0, 0))).astype(jnp.bfloat16)
    xf = jnp.pad(xf, ((0, nf_p - xf.shape[0]), (0, 0))).astype(jnp.bfloat16)
    top = jnp.concatenate([xv, jnp.zeros((nv_p, kf), jnp.bfloat16)], axis=1)
    bot = jnp.concatenate([jnp.zeros((nf_p, kv), jnp.bfloat16), xf], axis=1)
    return jnp.concatenate([top, bot], axis=0)


def encoder_forward_shared(xv, xf, w_front, b_vf, b_ff, w_r1, b_r1, w_r2, b_r2):
    """Single fused pallas_call for the shared-rare Encoder forward."""
    nv, kv = xv.shape
    nf, kf = xf.shape
    nv_p, nf_p = _round_up(nv, 8), _round_up(nf, 8)
    n_tot = nv_p + nf_p
    mid = w_front.shape[1]
    emb = w_r2.shape[1]

    x_block = _block_diag_input(xv, xf, nv_p, nf_p)

    flops = 2 * n_tot * ((kv + kf) * mid + mid * mid + mid * emb)
    bytes_accessed = (
        ((kv + kf) * mid + mid * mid + mid * emb) * 2     # bf16 weights
        + (3 * mid + emb) * 4                             # f32 biases
        + n_tot * (kv + kf) * 2                           # bf16 input
        + n_tot * emb * 4)                                # f32 output

    out = pl.pallas_call(
        functools.partial(_encoder_shared_kernel, nv_p),
        out_shape=jax.ShapeDtypeStruct((n_tot, emb), jnp.float32),
        in_specs=_vmem_specs(8),
        out_specs=pl.BlockSpec(memory_space=_VMEM),
        cost_estimate=pl.CostEstimate(flops=flops, transcendentals=0,
                                      bytes_accessed=bytes_accessed),
    )(x_block, w_front, b_vf.reshape(1, -1), b_ff.reshape(1, -1),
      w_r1, b_r1.reshape(1, -1), w_r2, b_r2.reshape(1, -1))

    return out[:nv], out[nv_p:nv_p + nf]


def encoder_forward_unshared(xv, xf, w_front, b_vf, b_ff,
                             w_r1_cat, b_r1_cat, w_r2_cat, b_r2_cat):
    """Single fused pallas_call for the non-shared Encoder forward."""
    nv, kv = xv.shape
    nf, kf = xf.shape
    nv_p, nf_p = _round_up(nv, 8), _round_up(nf, 8)
    n_tot = nv_p + nf_p
    mid = w_front.shape[1]
    emb = w_r2_cat.shape[1] // 2

    x_block = _block_diag_input(xv, xf, nv_p, nf_p)

    flops = 2 * n_tot * ((kv + kf) * mid + mid * 2 * mid + mid * 2 * emb)
    bytes_accessed = (
        ((kv + kf) * mid + mid * 2 * mid + mid * 2 * emb) * 2
        + (2 * mid + 2 * mid + 2 * emb) * 4
        + n_tot * (kv + kf) * 2
        + n_tot * emb * 4)

    out = pl.pallas_call(
        functools.partial(_encoder_unshared_kernel, nv_p),
        out_shape=jax.ShapeDtypeStruct((n_tot, emb), jnp.float32),
        in_specs=_vmem_specs(8),
        out_specs=pl.BlockSpec(memory_space=_VMEM),
        cost_estimate=pl.CostEstimate(flops=flops, transcendentals=0,
                                      bytes_accessed=bytes_accessed),
    )(x_block, w_front, b_vf.reshape(1, -1), b_ff.reshape(1, -1),
      w_r1_cat, b_r1_cat.reshape(1, -1), w_r2_cat, b_r2_cat.reshape(1, -1))

    return out[:nv], out[nv_p:nv_p + nf]


# --------------------------------------------------------------------------
# Module port
# --------------------------------------------------------------------------

def _init_linear(key, fan_in, fan_out):
    """PyTorch-style Linear init: U(-1/sqrt(fan_in), +1/sqrt(fan_in)).
    Weight returned as (fan_in, fan_out) bf16 (transpose of torch layout);
    bias f32.  Checkpoint loaders must transpose torch weights."""
    kw, kb = jax.random.split(key)
    bound = 1.0 / math.sqrt(fan_in)
    w = jax.random.uniform(kw, (fan_in, fan_out), jnp.float32,
                           minval=-bound, maxval=bound).astype(jnp.bfloat16)
    b = jax.random.uniform(kb, (fan_out,), jnp.float32,
                           minval=-bound, maxval=bound)
    return w, b


class EncoderPallas:
    """JAX/Pallas port of Encoder(voice_size, face_size, embedding_size, shared)."""

    def __init__(self, voice_size=192, face_size=512, embedding_size=128,
                 shared=True, key=None):
        if key is None:
            key = jax.random.PRNGKey(0)
        mid = 256
        self.shared = shared
        k_vf, k_ff, k_r1, k_r2, k_r1b, k_r2b = jax.random.split(key, 6)

        # front layers (per modality): Linear(in, 256) [+ ReLU in kernel]
        self.w_vf, self.b_vf = _init_linear(k_vf, voice_size, mid)
        self.w_ff, self.b_ff = _init_linear(k_ff, face_size, mid)
        # stacked front weight -> one MXU chain on block-diagonal input
        self.w_front = jnp.concatenate([self.w_vf, self.w_ff], axis=0)

        # rare layers: Linear(256,256) -> ReLU -> Linear(256, embedding)
        self.w_r1_face, self.b_r1_face = _init_linear(k_r1, mid, mid)
        self.w_r2_face, self.b_r2_face = _init_linear(k_r2, mid, embedding_size)
        if shared:
            self.w_r1_voice, self.b_r1_voice = self.w_r1_face, self.b_r1_face
            self.w_r2_voice, self.b_r2_voice = self.w_r2_face, self.b_r2_face
        else:
            self.w_r1_voice, self.b_r1_voice = _init_linear(k_r1b, mid, mid)
            self.w_r2_voice, self.b_r2_voice = _init_linear(k_r2b, mid, embedding_size)
            # column-stacked rare weights so the unshared rare stage runs as
            # one batched chain per layer (voice half | face half).
            self.w_r1_cat = jnp.concatenate([self.w_r1_voice, self.w_r1_face], axis=1)
            self.b_r1_cat = jnp.concatenate([self.b_r1_voice, self.b_r1_face])
            self.w_r2_cat = jnp.concatenate([self.w_r2_voice, self.w_r2_face], axis=1)
            self.b_r2_cat = jnp.concatenate([self.b_r2_voice, self.b_r2_face])

    def __call__(self, voice_data, face_data):
        # NOTE: if the encoder is called per-frame, fuse several frames into
        # one call (stack rows) to amortize the launch + weight-DMA cost.
        if self.shared:
            return encoder_forward_shared(
                voice_data, face_data,
                self.w_front, self.b_vf, self.b_ff,
                self.w_r1_face, self.b_r1_face, self.w_r2_face, self.b_r2_face)
        return encoder_forward_unshared(
            voice_data, face_data,
            self.w_front, self.b_vf, self.b_ff,
            self.w_r1_cat, self.b_r1_cat, self.w_r2_cat, self.b_r2_cat)


# --------------------------------------------------------------------------
# Pure-JAX reference (same bf16-operand / f32-accumulate quantization)
# --------------------------------------------------------------------------

def _reference_path(x, w1, b1, w2, b2, w3, b3):
    def mm(a, w):
        return jnp.dot(a.astype(jnp.bfloat16), w.astype(jnp.bfloat16),
                       preferred_element_type=jnp.float32)
    h1 = jnp.maximum(mm(x, w1) + b1, 0.0)
    h2 = jnp.maximum(mm(h1, w2) + b2, 0.0)
    return mm(h2, w3) + b3


if __name__ == "__main__":
    key = jax.random.PRNGKey(0)
    k_model, k_model2, k_voice, k_face = jax.random.split(key, 4)

    batch = 8
    voice_size, face_size, embedding_size = 192, 512, 128

    voice = jax.random.normal(k_voice, (batch, voice_size), jnp.float32)
    face = jax.random.normal(k_face, (batch, face_size), jnp.float32)

    # shared (default) configuration: one fused launch, batched rare matmuls
    enc = EncoderPallas(voice_size, face_size, embedding_size,
                        shared=True, key=k_model)
    v_emb, f_emb = enc(voice, face)
    jax.block_until_ready((v_emb, f_emb))

    v_ref = _reference_path(voice, enc.w_vf, enc.b_vf,
                            enc.w_r1_voice, enc.b_r1_voice,
                            enc.w_r2_voice, enc.b_r2_voice)
    f_ref = _reference_path(face, enc.w_ff, enc.b_ff,
                            enc.w_r1_face, enc.b_r1_face,
                            enc.w_r2_face, enc.b_r2_face)
    assert v_emb.shape == (batch, embedding_size)
    assert f_emb.shape == (batch, embedding_size)
    assert jnp.allclose(v_emb, v_ref, atol=2e-2, rtol=2e-2)
    assert jnp.allclose(f_emb, f_ref, atol=2e-2, rtol=2e-2)

    # non-shared configuration: still one fused kernel, 3 MXU chains
    enc_u = EncoderPallas(voice_size, face_size, embedding_size,
                          shared=False, key=k_model2)
    v_emb_u, f_emb_u = enc_u(voice, face)
    jax.block_until_ready((v_emb_u, f_emb_u))

    v_ref_u = _reference_path(voice, enc_u.w_vf, enc_u.b_vf,
                              enc_u.w_r1_voice, enc_u.b_r1_voice,
                              enc_u.w_r2_voice, enc_u.b_r2_voice)
    f_ref_u = _reference_path(face, enc_u.w_ff, enc_u.b_ff,
                              enc_u.w_r1_face, enc_u.b_r1_face,
                              enc_u.w_r2_face, enc_u.b_r2_face)
    assert jnp.allclose(v_emb_u, v_ref_u, atol=2e-2, rtol=2e-2)
    assert jnp.allclose(f_emb_u, f_ref_u, atol=2e-2, rtol=2e-2)

    print("KERNEL_OK")
</pallas_src>

<mosaic_0001>
module attributes {stable_mosaic.version = 11 : i64} {
  func.func @_encoder_shared_kernel(%arg0: memref<16x704xbf16, #tpu.memory_space<vmem>>, %arg1: memref<704x256xbf16, #tpu.memory_space<vmem>>, %arg2: memref<1x256xf32, #tpu.memory_space<vmem>>, %arg3: memref<1x256xf32, #tpu.memory_space<vmem>>, %arg4: memref<256x256xbf16, #tpu.memory_space<vmem>>, %arg5: memref<1x256xf32, #tpu.memory_space<vmem>>, %arg6: memref<256x128xbf16, #tpu.memory_space<vmem>>, %arg7: memref<1x128xf32, #tpu.memory_space<vmem>>, %arg8: memref<16x128xf32, #tpu.memory_space<vmem>>) attributes {dimension_semantics = [], scalar_prefetch = 0 : i64, scratch_operands = 0 : i64, tpu.core_type = #tpu.core_type<tc>} {
    %c0 = arith.constant 0 : index
    %c0_0 = arith.constant 0 : index
    %0 = vector.load %arg0[%c0, %c0_0] : memref<16x704xbf16, #tpu.memory_space<vmem>>, vector<16x704xbf16>
    %c0_1 = arith.constant 0 : index
    %c0_2 = arith.constant 0 : index
    %1 = vector.load %arg1[%c0_1, %c0_2] : memref<704x256xbf16, #tpu.memory_space<vmem>>, vector<704x256xbf16>
    %cst = arith.constant dense<0.000000e+00> : vector<16x256xf32>
    %2 = tpu.matmul %0, %1, %cst {dimension_numbers = #tpu.dot_dimension_numbers<[1], [0], [0], [1], [0, 0, 1, 1], [], []>} : vector<16x704xbf16>, vector<704x256xbf16>, vector<16x256xf32> -> vector<16x256xf32>
    %3 = tpu.iota {dimensions = array<i32: 0>} : vector<16x1xi32>
    %c8_i32 = arith.constant 8 : i32
    %4 = vector.broadcast %c8_i32 : i32 to vector<16x1xi32>
    %5 = arith.cmpi slt, %3, %4 : vector<16x1xi32>
    %c0_3 = arith.constant 0 : index
    %c0_4 = arith.constant 0 : index
    %6 = vector.load %arg2[%c0_3, %c0_4] : memref<1x256xf32, #tpu.memory_space<vmem>>, vector<1x256xf32>
    %c0_5 = arith.constant 0 : index
    %c0_6 = arith.constant 0 : index
    %7 = vector.load %arg3[%c0_5, %c0_6] : memref<1x256xf32, #tpu.memory_space<vmem>>, vector<1x256xf32>
    %8 = vector.shape_cast %5 : vector<16x1xi1> to vector<16x1xi1>
    %9 = vector.broadcast %8 : vector<16x1xi1> to vector<16x256xi1>
    %10 = vector.shape_cast %6 : vector<1x256xf32> to vector<1x256xf32>
    %11 = vector.broadcast %10 : vector<1x256xf32> to vector<16x256xf32>
    %12 = vector.shape_cast %7 : vector<1x256xf32> to vector<1x256xf32>
    %13 = vector.broadcast %12 : vector<1x256xf32> to vector<16x256xf32>
    %14 = arith.select %9, %11, %13 : vector<16x256xi1>, vector<16x256xf32>
    %15 = arith.addf %2, %14 : vector<16x256xf32>
    %cst_7 = arith.constant 0.000000e+00 : f32
    %16 = vector.broadcast %cst_7 : f32 to vector<16x256xf32>
    %17 = arith.maximumf %15, %16 : vector<16x256xf32>
    %18 = arith.truncf %17 : vector<16x256xf32> to vector<16x256xbf16>
    %c0_8 = arith.constant 0 : index
    %c0_9 = arith.constant 0 : index
    %19 = vector.load %arg4[%c0_8, %c0_9] : memref<256x256xbf16, #tpu.memory_space<vmem>>, vector<256x256xbf16>
    %cst_10 = arith.constant dense<0.000000e+00> : vector<16x256xf32>
    %20 = tpu.matmul %18, %19, %cst_10 {dimension_numbers = #tpu.dot_dimension_numbers<[1], [0], [0], [1], [0, 0, 1, 1], [], []>} : vector<16x256xbf16>, vector<256x256xbf16>, vector<16x256xf32> -> vector<16x256xf32>
    %c0_11 = arith.constant 0 : index
    %c0_12 = arith.constant 0 : index
    %21 = vector.load %arg5[%c0_11, %c0_12] : memref<1x256xf32, #tpu.memory_space<vmem>>, vector<1x256xf32>
    %22 = vector.broadcast %21 : vector<1x256xf32> to vector<16x256xf32>
    %23 = arith.addf %20, %22 : vector<16x256xf32>
    %cst_13 = arith.constant 0.000000e+00 : f32
    %24 = vector.broadcast %cst_13 : f32 to vector<16x256xf32>
    %25 = arith.maximumf %23, %24 : vector<16x256xf32>
    %26 = arith.truncf %25 : vector<16x256xf32> to vector<16x256xbf16>
    %c0_14 = arith.constant 0 : index
    %c0_15 = arith.constant 0 : index
    %27 = vector.load %arg6[%c0_14, %c0_15] : memref<256x128xbf16, #tpu.memory_space<vmem>>, vector<256x128xbf16>
    %cst_16 = arith.constant dense<0.000000e+00> : vector<16x128xf32>
    %28 = tpu.matmul %26, %27, %cst_16 {dimension_numbers = #tpu.dot_dimension_numbers<[1], [0], [0], [1], [0, 0, 1, 1], [], []>} : vector<16x256xbf16>, vector<256x128xbf16>, vector<16x128xf32> -> vector<16x128xf32>
    %c0_17 = arith.constant 0 : index
    %c0_18 = arith.constant 0 : index
    %29 = vector.load %arg7[%c0_17, %c0_18] : memref<1x128xf32, #tpu.memory_space<vmem>>, vector<1x128xf32>
    %30 = vector.broadcast %29 : vector<1x128xf32> to vector<16x128xf32>
    %31 = arith.addf %28, %30 : vector<16x128xf32>
    %c0_19 = arith.constant 0 : index
    %c0_20 = arith.constant 0 : index
    %32 = vector.load %arg8[%c0_19, %c0_20] : memref<16x128xf32, #tpu.memory_space<vmem>>, vector<16x128xf32>
    tpu.vector_store %arg8[%c0_19, %c0_20], %31 {strides = array<i32>} : memref<16x128xf32, #tpu.memory_space<vmem>>, vector<16x128xf32>,
    return
  }
}

</mosaic_0001>

<llo_original>
// kernel: tpu_custom_call.1
$region0: #{tpu_custom_call.1}
  #allocation0 [shape = 'u32[]', space=smem, size = 0x4, offset = 0x4, fixed_abs, tag = 'smem constant byte address 0x4 - core index']
  #allocation1 [shape = 'u32[144,128]{1,0:T(1,128)}', space=vmem, size = 0x12000, scoped, tag = 'internal scratch']
  %s0 = inlined_call_operand.hbm [shape: bf16[16,704], index: 0, kind: input, shape index: {}]
  %s1 = inlined_call_operand.hbm [shape: bf16[704,256], index: 1, kind: input, shape index: {}]
  %s2 = inlined_call_operand.vmem [shape: f32[1,256], index: 2, kind: input, shape index: {}]
  %s3 = inlined_call_operand.vmem [shape: f32[1,256], index: 3, kind: input, shape index: {}]
  %s4 = inlined_call_operand.hbm [shape: bf16[256,256], index: 4, kind: input, shape index: {}]
  %s5 = inlined_call_operand.vmem [shape: f32[1,256], index: 5, kind: input, shape index: {}]
  %s6 = inlined_call_operand.hbm [shape: bf16[256,128], index: 6, kind: input, shape index: {}]
  %s7 = inlined_call_operand.vmem [shape: f32[1,128], index: 7, kind: input, shape index: {}]
  %s8 = inlined_call_operand.hbm [shape: f32[16,128], index: 8, kind: output, shape index: {}]
  %s9 = sld [smem:[#allocation0]]
  $region58: #{tpu_custom_call.1} parent=0
    _
  %s11 = ssub.s32 1, %s9
  %s12 = scalar_select 0, %s11, %s9
  $region1: #{tpu_custom_call.1} parent=0
    #allocation2 [shape = 'u8[24576]{0}', space=vmem, size = 0x6000, scoped, tag = 'input window, operand 0, single buffered']
    #allocation3 [shape = 's32[1]{0}', space=sflag, size = 0x4, scoped, tag = 'scoped memory for tpu_custom_call.1']
    #allocation4 [shape = 's32[1]{0}', space=sflag, size = 0x4, scoped, tag = 'scoped memory for tpu_custom_call.1']
    #allocation5 [shape = 'u8[360448]{0}', space=vmem, size = 0x58000, scoped, tag = 'input window, operand 1, single buffered']
    #allocation6 [shape = 's32[1]{0}', space=sflag, size = 0x4, scoped, tag = 'scoped memory for tpu_custom_call.1']
    #allocation7 [shape = 'u8[131072]{0}', space=vmem, size = 0x20000, scoped, tag = 'input window, operand 4, single buffered']
    #allocation8 [shape = 'u8[65536]{0}', space=vmem, size = 0x10000, scoped, tag = 'input window, operand 6, single buffered']
    #allocation9 [shape = 's32[1]{0}', space=sflag, size = 0x4, scoped, tag = 'scoped memory for tpu_custom_call.1']
    #allocation10 [shape = 'u8[8192]{0}', space=vmem, size = 0x2000, scoped, tag = 'output window, operand 0, single buffered']
    %13 = vsyncpa [#allocation3], 0
    %14 = vsyncpa [#allocation6], 0
    %15 = vsyncpa [#allocation9], 0
    %16 = vsyncpa [#allocation4], 0
    // Predicated region
    $region2: #{tpu_custom_call.1} parent=1 // pred_check
      _
    $region3: #{tpu_custom_call.1} parent=1 // pred_check_branch
      %18 = sbr.rel (0) target = $region5
    $region4: #{tpu_custom_call.1} parent=1 // pred_region
      %s20 = ssub.s32 768, 768
      %21 = vsyncadd [#allocation3], %s20
      %s22 = sshll.u32 [#allocation2], 4
      %s23 = int_to_ptr.vmem [resolvable:$true] %s22
      %28 = dma.hbm_to_vmem [thread:$0]  %s0, 768, %s23, [#allocation3], 384, 384, 24
    $region5: #{tpu_custom_call.1} parent=1 // pred_fallthru
      _
    // Predicated region
    $region6: #{tpu_custom_call.1} parent=1 // pred_check
      _
    $region7: #{tpu_custom_call.1} parent=1 // pred_check_branch
      %30 = sbr.rel (0) target = $region9
    $region8: #{tpu_custom_call.1} parent=1 // pred_region
      %s32 = ssub.s32 11264, 11264
      %33 = vsyncadd [#allocation6], %s32
      %s34 = sshll.u32 [#allocation5], 4
      %s35 = int_to_ptr.vmem [resolvable:$true] %s34
      %40 = dma.hbm_to_vmem [thread:$0]  %s1, 11264, %s35, [#allocation6], 128, 128, 8
    $region9: #{tpu_custom_call.1} parent=1 // pred_fallthru
      _
    // Predicated region
    $region10: #{tpu_custom_call.1} parent=1 // pred_check
      _
    $region11: #{tpu_custom_call.1} parent=1 // pred_check_branch
      %42 = sbr.rel (0) target = $region13
    $region12: #{tpu_custom_call.1} parent=1 // pred_region
      _
    $region13: #{tpu_custom_call.1} parent=1 // pred_fallthru
      _
    // Predicated region
    $region14: #{tpu_custom_call.1} parent=1 // pred_check
      _
    $region15: #{tpu_custom_call.1} parent=1 // pred_check_branch
      %44 = sbr.rel (0) target = $region17
    $region16: #{tpu_custom_call.1} parent=1 // pred_region
      _
    $region17: #{tpu_custom_call.1} parent=1 // pred_fallthru
      _
    // Predicated region
    $region18: #{tpu_custom_call.1} parent=1 // pred_check
      _
    $region19: #{tpu_custom_call.1} parent=1 // pred_check_branch
      %46 = sbr.rel (0) target = $region21
    $region20: #{tpu_custom_call.1} parent=1 // pred_region
      %s48 = ssub.s32 4096, 4096
      %49 = vsyncadd [#allocation6], %s48
      %s50 = sshll.u32 [#allocation7], 4
      %s51 = int_to_ptr.vmem [resolvable:$true] %s50
      %56 = dma.hbm_to_vmem [thread:$0]  %s4, 4096, %s51, [#allocation6], 128, 128, 8
    $region21: #{tpu_custom_call.1} parent=1 // pred_fallthru
      _
    // Predicated region
    $region22: #{tpu_custom_call.1} parent=1 // pred_check
      _
    $region23: #{tpu_custom_call.1} parent=1 // pred_check_branch
      %58 = sbr.rel (0) target = $region25
    $region24: #{tpu_custom_call.1} parent=1 // pred_region
      _
    $region25: #{tpu_custom_call.1} parent=1 // pred_fallthru
      _
    // Predicated region
    $region26: #{tpu_custom_call.1} parent=1 // pred_check
      _
    $region27: #{tpu_custom_call.1} parent=1 // pred_check_branch
      %60 = sbr.rel (0) target = $region29
    $region28: #{tpu_custom_call.1} parent=1 // pred_region
      %s62 = ssub.s32 2048, 2048
      %63 = vsyncadd [#allocation9], %s62
      %s64 = sshll.u32 [#allocation8], 4
      %s65 = int_to_ptr.vmem [resolvable:$true] %s64
      %70 = dma.hbm_to_vmem [thread:$0]  %s6, 2048, %s65, [#allocation9], 64, 64, 4
    $region29: #{tpu_custom_call.1} parent=1 // pred_fallthru
      _
    // Predicated region
    $region30: #{tpu_custom_call.1} parent=1 // pred_check
      _
    $region31: #{tpu_custom_call.1} parent=1 // pred_check_branch
      %72 = sbr.rel (0) target = $region33
    $region32: #{tpu_custom_call.1} parent=1 // pred_region
      _
    $region33: #{tpu_custom_call.1} parent=1 // pred_fallthru
      _
    // Predicated region
    $region34: #{tpu_custom_call.1} parent=1 // pred_check
      _
    $region35: #{tpu_custom_call.1} parent=1 // pred_check_branch
      %74 = sbr.rel (0) target = $region37
    $region36: #{tpu_custom_call.1} parent=1 // pred_region
      %75 = dma.done [#allocation3], 768
    $region37: #{tpu_custom_call.1} parent=1 // pred_fallthru
      _
    // Predicated region
    $region38: #{tpu_custom_call.1} parent=1 // pred_check
      _
    $region39: #{tpu_custom_call.1} parent=1 // pred_check_branch
      %77 = sbr.rel (0) target = $region41
    $region40: #{tpu_custom_call.1} parent=1 // pred_region
      %78 = dma.done [#allocation6], 11264
    $region41: #{tpu_custom_call.1} parent=1 // pred_fallthru
      _
    // Predicated region
    $region42: #{tpu_custom_call.1} parent=1 // pred_check
      _
    $region43: #{tpu_custom_call.1} parent=1 // pred_check_branch
      %80 = sbr.rel (0) target = $region45
    $region44: #{tpu_custom_call.1} parent=1 // pred_region
      %81 = dma.done [#allocation6], 4096
    $region45: #{tpu_custom_call.1} parent=1 // pred_fallthru
      _
    // Predicated region
    $region46: #{tpu_custom_call.1} parent=1 // pred_check
      _
    $region47: #{tpu_custom_call.1} parent=1 // pred_check_branch
      %83 = sbr.rel (0) target = $region49
    $region48: #{tpu_custom_call.1} parent=1 // pred_region
      %84 = dma.done [#allocation9], 2048
    $region49: #{tpu_custom_call.1} parent=1 // pred_fallthru
      _
    %v86 = vld [vmem:[#allocation2] sm:$0xff]
    %v87 = vld [vmem:[#allocation2 + $0x8] sm:$0xff]
    %v88 = vld [vmem:[#allocation2 + $0x10] sm:$0xff]
    %v89 = vld [vmem:[#allocation2 + $0x18] sm:$0xff]
    %v90 = vld [vmem:[#allocation2 + $0x20] sm:$0xff]
    %v91 = vld [vmem:[#allocation2 + $0x28] sm:$0xff]
    %v92 = vld [vmem:[#allocation5] sm:$0xff]
    %v93 = vld [vmem:[#allocation5 + $0x8] sm:$0xff]
    %v94 = vld [vmem:[#allocation5 + $0x10] sm:$0xff]
    %v95 = vld [vmem:[#allocation5 + $0x18] sm:$0xff]
    %v96 = vld [vmem:[#allocation5 + $0x20] sm:$0xff]
    %v97 = vld [vmem:[#allocation5 + $0x28] sm:$0xff]
    %v98 = vld [vmem:[#allocation5 + $0x30] sm:$0xff]
    %v99 = vld [vmem:[#allocation5 + $0x38] sm:$0xff]
    %v100 = vld [vmem:[#allocation5 + $0x40] sm:$0xff]
    %v101 = vld [vmem:[#allocation5 + $0x48] sm:$0xff]
    %v102 = vld [vmem:[#allocation5 + $0x50] sm:$0xff]
    %v103 = vld [vmem:[#allocation5 + $0x58] sm:$0xff]
    %v104 = vld [vmem:[#allocation5 + $0x60] sm:$0xff]
    %v105 = vld [vmem:[#allocation5 + $0x68] sm:$0xff]
    %v106 = vld [vmem:[#allocation5 + $0x70] sm:$0xff]
    %v107 = vld [vmem:[#allocation5 + $0x78] sm:$0xff]
    %v108 = vld [vmem:[#allocation5 + $0x80] sm:$0xff]
    %v109 = vld [vmem:[#allocation5 + $0x88] sm:$0xff]
    %v110 = vld [vmem:[#allocation5 + $0x90] sm:$0xff]
    %v111 = vld [vmem:[#allocation5 + $0x98] sm:$0xff]
    %v112 = vld [vmem:[#allocation5 + $0xa0] sm:$0xff]
    %v113 = vld [vmem:[#allocation5 + $0xa8] sm:$0xff]
    %v114 = vld [vmem:[#allocation5 + $0xb0] sm:$0xff]
    %v115 = vld [vmem:[#allocation5 + $0xb8] sm:$0xff]
    %v116 = vld [vmem:[#allocation5 + $0xc0] sm:$0xff]
    %v117 = vld [vmem:[#allocation5 + $0xc8] sm:$0xff]
    %v118 = vld [vmem:[#allocation5 + $0xd0] sm:$0xff]
    %v119 = vld [vmem:[#allocation5 + $0xd8] sm:$0xff]
    %v120 = vld [vmem:[#allocation5 + $0xe0] sm:$0xff]
    %v121 = vld [vmem:[#allocation5 + $0xe8] sm:$0xff]
    %v122 = vld [vmem:[#allocation5 + $0xf0] sm:$0xff]
    %v123 = vld [vmem:[#allocation5 + $0xf8] sm:$0xff]
    %v124 = vld [vmem:[#allocation5 + $0x100] sm:$0xff]
    %v125 = vld [vmem:[#allocation5 + $0x108] sm:$0xff]
    %v126 = vld [vmem:[#allocation5 + $0x110] sm:$0xff]
    %v127 = vld [vmem:[#allocation5 + $0x118] sm:$0xff]
    %v128 = vld [vmem:[#allocation5 + $0x120] sm:$0xff]
    %v129 = vld [vmem:[#allocation5 + $0x128] sm:$0xff]
    %v130 = vld [vmem:[#allocation5 + $0x130] sm:$0xff]
    %v131 = vld [vmem:[#allocation5 + $0x138] sm:$0xff]
    %v132 = vld [vmem:[#allocation5 + $0x140] sm:$0xff]
    %v133 = vld [vmem:[#allocation5 + $0x148] sm:$0xff]
    %v134 = vld [vmem:[#allocation5 + $0x150] sm:$0xff]
    %v135 = vld [vmem:[#allocation5 + $0x158] sm:$0xff]
    %v136 = vld [vmem:[#allocation5 + $0x160] sm:$0xff]
    %v137 = vld [vmem:[#allocation5 + $0x168] sm:$0xff]
    %v138 = vld [vmem:[#allocation5 + $0x170] sm:$0xff]
    %v139 = vld [vmem:[#allocation5 + $0x178] sm:$0xff]
    %v140 = vld [vmem:[#allocation5 + $0x180] sm:$0xff]
    %v141 = vld [vmem:[#allocation5 + $0x188] sm:$0xff]
    %v142 = vld [vmem:[#allocation5 + $0x190] sm:$0xff]
    %v143 = vld [vmem:[#allocation5 + $0x198] sm:$0xff]
    %v144 = vld [vmem:[#allocation5 + $0x1a0] sm:$0xff]
    %v145 = vld [vmem:[#allocation5 + $0x1a8] sm:$0xff]
    %v146 = vld [vmem:[#allocation5 + $0x1b0] sm:$0xff]
    %v147 = vld [vmem:[#allocation5 + $0x1b8] sm:$0xff]
    %v148 = vld [vmem:[#allocation5 + $0x1c0] sm:$0xff]
    %v149 = vld [vmem:[#allocation5 + $0x1c8] sm:$0xff]
    %v150 = vld [vmem:[#allocation5 + $0x1d0] sm:$0xff]
    %v151 = vld [vmem:[#allocation5 + $0x1d8] sm:$0xff]
    %v152 = vld [vmem:[#allocation5 + $0x1e0] sm:$0xff]
    %v153 = vld [vmem:[#allocation5 + $0x1e8] sm:$0xff]
    %v154 = vld [vmem:[#allocation5 + $0x1f0] sm:$0xff]
    %v155 = vld [vmem:[#allocation5 + $0x1f8] sm:$0xff]
    %v156 = vld [vmem:[#allocation5 + $0x200] sm:$0xff]
    %v157 = vld [vmem:[#allocation5 + $0x208] sm:$0xff]
    %v158 = vld [vmem:[#allocation5 + $0x210] sm:$0xff]
    %v159 = vld [vmem:[#allocation5 + $0x218] sm:$0xff]
    %v160 = vld [vmem:[#allocation5 + $0x220] sm:$0xff]
    %v161 = vld [vmem:[#allocation5 + $0x228] sm:$0xff]
    %v162 = vld [vmem:[#allocation5 + $0x230] sm:$0xff]
    %v163 = vld [vmem:[#allocation5 + $0x238] sm:$0xff]
    %v164 = vld [vmem:[#allocation5 + $0x240] sm:$0xff]
    %v165 = vld [vmem:[#allocation5 + $0x248] sm:$0xff]
    %v166 = vld [vmem:[#allocation5 + $0x250] sm:$0xff]
    %v167 = vld [vmem:[#allocation5 + $0x258] sm:$0xff]
    %v168 = vld [vmem:[#allocation5 + $0x260] sm:$0xff]
    %v169 = vld [vmem:[#allocation5 + $0x268] sm:$0xff]
    %v170 = vld [vmem:[#allocation5 + $0x270] sm:$0xff]
    %v171 = vld [vmem:[#allocation5 + $0x278] sm:$0xff]
    %v172 = vld [vmem:[#allocation5 + $0x280] sm:$0xff]
    %v173 = vld [vmem:[#allocation5 + $0x288] sm:$0xff]
    %v174 = vld [vmem:[#allocation5 + $0x290] sm:$0xff]
    %v175 = vld [vmem:[#allocation5 + $0x298] sm:$0xff]
    %v176 = vld [vmem:[#allocation5 + $0x2a0] sm:$0xff]
    %v177 = vld [vmem:[#allocation5 + $0x2a8] sm:$0xff]
    %v178 = vld [vmem:[#allocation5 + $0x2b0] sm:$0xff]
    %v179 = vld [vmem:[#allocation5 + $0x2b8] sm:$0xff]
    %v180 = vlaneseq
    %v181 = vshrl.u32 %v180, 7
    %v182 = vadd.s32 %v181, 8
    %vm183 = vcmp.lt.s32.totalorder %v181, 8
    %vm184 = vcmp.lt.s32.totalorder %v182, 8
    %v185 = vld [vmem:[%s2] sm:$0x3]
    %v186 = vld [vmem:[%s3] sm:$0x3]
    %v187 = vsel %vm183, 1, 0
    %v188 = vsel %vm184, 1, 0
    %vm189 = vcmp.eq.s32.totalorder %v187, 1
    %vm190 = vcmp.eq.s32.totalorder %v188, 1
    %v192 = vlaneseq
    %v193 = vshrl.u32 %v192, 7
    %v194 = vsub.s32 0, %v193
    %v195 = vrot.slane %v185, %v194
    %v196 = vlaneseq
    %v197 = vshrl.u32 %v196, 7
    %v198 = vsub.s32 1, %v197
    %v199 = vrot.slane %v185, %v198
    %v203 = vlaneseq
    %v204 = vshrl.u32 %v203, 7
    %v205 = vsub.s32 0, %v204
    %v206 = vrot.slane %v186, %v205
    %v207 = vlaneseq
    %v208 = vshrl.u32 %v207, 7
    %v209 = vsub.s32 1, %v208
    %v210 = vrot.slane %v186, %v209
    %v213 = vsel %vm189, %v195, %v206
    %v214 = vsel %vm189, %v199, %v210
    %v215 = vsel %vm190, %v195, %v206
    %v216 = vsel %vm190, %v199, %v210
    %v223 = vunpack.c.l.b16 %v86
    %v224 = vunpack.c.h.b16 %v86
    %v225 = vunpack.c.l.b16 %v87
    %v226 = vunpack.c.h.b16 %v87
    %v227 = vunpack.c.l.b16 %v88
    %v228 = vunpack.c.h.b16 %v88
    %v229 = vunpack.c.l.b16 %v89
    %v230 = vunpack.c.h.b16 %v89
    %v231 = vunpack.c.l.b16 %v90
    %v232 = vunpack.c.h.b16 %v90
    %v233 = vunpack.c.l.b16 %v91
    %v234 = vunpack.c.h.b16 %v91
    %v235 = vpack.c.b16 %v229, %v223
    %v236 = vpack.c.b16 %v230, %v224
    %v237 = vpack.c.b16 %v231, %v225
    %v238 = vpack.c.b16 %v232, %v226
    %v239 = vpack.c.b16 %v233, %v227
    %v240 = vpack.c.b16 %v234, %v228
    %v334 = vunpack.c.l.b16 %v92
    %v335 = vunpack.c.h.b16 %v92
    %v336 = vunpack.c.l.b16 %v93
    %v337 = vunpack.c.h.b16 %v93
    %v338 = vunpack.c.l.b16 %v94
    %v339 = vunpack.c.h.b16 %v94
    %v340 = vunpack.c.l.b16 %v95
    %v341 = vunpack.c.h.b16 %v95
    %v342 = vunpack.c.l.b16 %v96
    %v343 = vunpack.c.h.b16 %v96
    %v344 = vunpack.c.l.b16 %v97
    %v345 = vunpack.c.h.b16 %v97
    %v346 = vunpack.c.l.b16 %v98
    %v347 = vunpack.c.h.b16 %v98
    %v348 = vunpack.c.l.b16 %v99
    %v349 = vunpack.c.h.b16 %v99
    %v350 = vunpack.c.l.b16 %v100
    %v351 = vunpack.c.h.b16 %v100
    %v352 = vunpack.c.l.b16 %v101
    %v353 = vunpack.c.h.b16 %v101
    %v354 = vunpack.c.l.b16 %v102
    %v355 = vunpack.c.h.b16 %v102
    %v356 = vunpack.c.l.b16 %v103
    %v357 = vunpack.c.h.b16 %v103
    %v358 = vunpack.c.l.b16 %v104
    %v359 = vunpack.c.h.b16 %v104
    %v360 = vunpack.c.l.b16 %v105
    %v361 = vunpack.c.h.b16 %v105
    %v362 = vunpack.c.l.b16 %v106
    %v363 = vunpack.c.h.b16 %v106
    %v364 = vunpack.c.l.b16 %v107
    %v365 = vunpack.c.h.b16 %v107
    %v366 = vunpack.c.l.b16 %v108
    %v367 = vunpack.c.h.b16 %v108
    %v368 = vunpack.c.l.b16 %v109
    %v369 = vunpack.c.h.b16 %v109
    %v370 = vunpack.c.l.b16 %v110
    %v371 = vunpack.c.h.b16 %v110
    %v372 = vunpack.c.l.b16 %v111
    %v373 = vunpack.c.h.b16 %v111
    %v374 = vunpack.c.l.b16 %v112
    %v375 = vunpack.c.h.b16 %v112
    %v376 = vunpack.c.l.b16 %v113
    %v377 = vunpack.c.h.b16 %v113
    %v378 = vunpack.c.l.b16 %v114
    %v379 = vunpack.c.h.b16 %v114
    %v380 = vunpack.c.l.b16 %v115
    %v381 = vunpack.c.h.b16 %v115
    %v382 = vunpack.c.l.b16 %v116
    %v383 = vunpack.c.h.b16 %v116
    %v384 = vunpack.c.l.b16 %v117
    %v385 = vunpack.c.h.b16 %v117
    %v386 = vunpack.c.l.b16 %v118
    %v387 = vunpack.c.h.b16 %v118
    %v388 = vunpack.c.l.b16 %v119
    %v389 = vunpack.c.h.b16 %v119
    %v390 = vunpack.c.l.b16 %v120
    %v391 = vunpack.c.h.b16 %v120
    %v392 = vunpack.c.l.b16 %v121
    %v393 = vunpack.c.h.b16 %v121
    %v394 = vunpack.c.l.b16 %v122
    %v395 = vunpack.c.h.b16 %v122
    %v396 = vunpack.c.l.b16 %v123
    %v397 = vunpack.c.h.b16 %v123
    %v398 = vunpack.c.l.b16 %v124
    %v399 = vunpack.c.h.b16 %v124
    %v400 = vunpack.c.l.b16 %v125
    %v401 = vunpack.c.h.b16 %v125
    %v402 = vunpack.c.l.b16 %v126
    %v403 = vunpack.c.h.b16 %v126
    %v404 = vunpack.c.l.b16 %v127
    %v405 = vunpack.c.h.b16 %v127
    %v406 = vunpack.c.l.b16 %v128
    %v407 = vunpack.c.h.b16 %v128
    %v408 = vunpack.c.l.b16 %v129
    %v409 = vunpack.c.h.b16 %v129
    %v410 = vunpack.c.l.b16 %v130
    %v411 = vunpack.c.h.b16 %v130
    %v412 = vunpack.c.l.b16 %v131
    %v413 = vunpack.c.h.b16 %v131
    %v414 = vunpack.c.l.b16 %v132
    %v415 = vunpack.c.h.b16 %v132
    %v416 = vunpack.c.l.b16 %v133
    %v417 = vunpack.c.h.b16 %v133
    %v418 = vunpack.c.l.b16 %v134
    %v419 = vunpack.c.h.b16 %v134
    %v420 = vunpack.c.l.b16 %v135
    %v421 = vunpack.c.h.b16 %v135
    %v422 = vunpack.c.l.b16 %v136
    %v423 = vunpack.c.h.b16 %v136
    %v424 = vunpack.c.l.b16 %v137
    %v425 = vunpack.c.h.b16 %v137
    %v426 = vunpack.c.l.b16 %v138
    %v427 = vunpack.c.h.b16 %v138
    %v428 = vunpack.c.l.b16 %v139
    %v429 = vunpack.c.h.b16 %v139
    %v430 = vunpack.c.l.b16 %v140
    %v431 = vunpack.c.h.b16 %v140
    %v432 = vunpack.c.l.b16 %v141
    %v433 = vunpack.c.h.b16 %v141
    %v434 = vunpack.c.l.b16 %v142
    %v435 = vunpack.c.h.b16 %v142
    %v436 = vunpack.c.l.b16 %v143
    %v437 = vunpack.c.h.b16 %v143
    %v438 = vunpack.c.l.b16 %v144
    %v439 = vunpack.c.h.b16 %v144
    %v440 = vunpack.c.l.b16 %v145
    %v441 = vunpack.c.h.b16 %v145
    %v442 = vunpack.c.l.b16 %v146
    %v443 = vunpack.c.h.b16 %v146
    %v444 = vunpack.c.l.b16 %v147
    %v445 = vunpack.c.h.b16 %v147
    %v446 = vunpack.c.l.b16 %v148
    %v447 = vunpack.c.h.b16 %v148
    %v448 = vunpack.c.l.b16 %v149
    %v449 = vunpack.c.h.b16 %v149
    %v450 = vunpack.c.l.b16 %v150
    %v451 = vunpack.c.h.b16 %v150
    %v452 = vunpack.c.l.b16 %v151
    %v453 = vunpack.c.h.b16 %v151
    %v454 = vunpack.c.l.b16 %v152
    %v455 = vunpack.c.h.b16 %v152
    %v456 = vunpack.c.l.b16 %v153
    %v457 = vunpack.c.h.b16 %v153
    %v458 = vunpack.c.l.b16 %v154
    %v459 = vunpack.c.h.b16 %v154
    %v460 = vunpack.c.l.b16 %v155
    %v461 = vunpack.c.h.b16 %v155
    %v462 = vunpack.c.l.b16 %v156
    %v463 = vunpack.c.h.b16 %v156
    %v464 = vunpack.c.l.b16 %v157
    %v465 = vunpack.c.h.b16 %v157
    %v466 = vunpack.c.l.b16 %v158
    %v467 = vunpack.c.h.b16 %v158
    %v468 = vunpack.c.l.b16 %v159
    %v469 = vunpack.c.h.b16 %v159
    %v470 = vunpack.c.l.b16 %v160
    %v471 = vunpack.c.h.b16 %v160
    %v472 = vunpack.c.l.b16 %v161
    %v473 = vunpack.c.h.b16 %v161
    %v474 = vunpack.c.l.b16 %v162
    %v475 = vunpack.c.h.b16 %v162
    %v476 = vunpack.c.l.b16 %v163
    %v477 = vunpack.c.h.b16 %v163
    %v478 = vunpack.c.l.b16 %v164
    %v479 = vunpack.c.h.b16 %v164
    %v480 = vunpack.c.l.b16 %v165
    %v481 = vunpack.c.h.b16 %v165
    %v482 = vunpack.c.l.b16 %v166
    %v483 = vunpack.c.h.b16 %v166
    %v484 = vunpack.c.l.b16 %v167
    %v485 = vunpack.c.h.b16 %v167
    %v486 = vunpack.c.l.b16 %v168
    %v487 = vunpack.c.h.b16 %v168
    %v488 = vunpack.c.l.b16 %v169
    %v489 = vunpack.c.h.b16 %v169
    %v490 = vunpack.c.l.b16 %v170
    %v491 = vunpack.c.h.b16 %v170
    %v492 = vunpack.c.l.b16 %v171
    %v493 = vunpack.c.h.b16 %v171
    %v494 = vunpack.c.l.b16 %v172
    %v495 = vunpack.c.h.b16 %v172
    %v496 = vunpack.c.l.b16 %v173
    %v497 = vunpack.c.h.b16 %v173
    %v498 = vunpack.c.l.b16 %v174
    %v499 = vunpack.c.h.b16 %v174
    %v500 = vunpack.c.l.b16 %v175
    %v501 = vunpack.c.h.b16 %v175
    %v502 = vunpack.c.l.b16 %v176
    %v503 = vunpack.c.h.b16 %v176
    %v504 = vunpack.c.l.b16 %v177
    %v505 = vunpack.c.h.b16 %v177
    %v506 = vunpack.c.l.b16 %v178
    %v507 = vunpack.c.h.b16 %v178
    %v508 = vunpack.c.l.b16 %v179
    %v509 = vunpack.c.h.b16 %v179
    %v510 = vpack.c.b16 %v336, %v334
    %v511 = vpack.c.b16 %v337, %v335
    %v512 = vpack.c.b16 %v340, %v338
    %v513 = vpack.c.b16 %v341, %v339
    %v514 = vpack.c.b16 %v344, %v342
    %v515 = vpack.c.b16 %v345, %v343
    %v516 = vpack.c.b16 %v348, %v346
    %v517 = vpack.c.b16 %v349, %v347
    %v518 = vpack.c.b16 %v352, %v350
    %v519 = vpack.c.b16 %v353, %v351
    %v520 = vpack.c.b16 %v356, %v354
    %v521 = vpack.c.b16 %v357, %v355
    %v522 = vpack.c.b16 %v360, %v358
    %v523 = vpack.c.b16 %v361, %v359
    %v524 = vpack.c.b16 %v364, %v362
    %v525 = vpack.c.b16 %v365, %v363
    %v526 = vpack.c.b16 %v368, %v366
    %v527 = vpack.c.b16 %v369, %v367
    %v528 = vpack.c.b16 %v372, %v370
    %v529 = vpack.c.b16 %v373, %v371
    %v530 = vpack.c.b16 %v376, %v374
    %v531 = vpack.c.b16 %v377, %v375
    %v532 = vpack.c.b16 %v380, %v378
    %v533 = vpack.c.b16 %v381, %v379
    %v534 = vpack.c.b16 %v384, %v382
    %v535 = vpack.c.b16 %v385, %v383
    %v536 = vpack.c.b16 %v388, %v386
    %v537 = vpack.c.b16 %v389, %v387
    %v538 = vpack.c.b16 %v392, %v390
    %v539 = vpack.c.b16 %v393, %v391
    %v540 = vpack.c.b16 %v396, %v394
    %v541 = vpack.c.b16 %v397, %v395
    %v542 = vpack.c.b16 %v400, %v398
    %v543 = vpack.c.b16 %v401, %v399
    %v544 = vpack.c.b16 %v404, %v402
    %v545 = vpack.c.b16 %v405, %v403
    %v546 = vpack.c.b16 %v408, %v406
    %v547 = vpack.c.b16 %v409, %v407
    %v548 = vpack.c.b16 %v412, %v410
    %v549 = vpack.c.b16 %v413, %v411
    %v550 = vpack.c.b16 %v416, %v414
    %v551 = vpack.c.b16 %v417, %v415
    %v552 = vpack.c.b16 %v420, %v418
    %v553 = vpack.c.b16 %v421, %v419
    %v554 = vpack.c.b16 %v424, %v422
    %v555 = vpack.c.b16 %v425, %v423
    %v556 = vpack.c.b16 %v428, %v426
    %v557 = vpack.c.b16 %v429, %v427
    %v558 = vpack.c.b16 %v432, %v430
    %v559 = vpack.c.b16 %v433, %v431
    %v560 = vpack.c.b16 %v436, %v434
    %v561 = vpack.c.b16 %v437, %v435
    %v562 = vpack.c.b16 %v440, %v438
    %v563 = vpack.c.b16 %v441, %v439
    %v564 = vpack.c.b16 %v444, %v442
    %v565 = vpack.c.b16 %v445, %v443
    %v566 = vpack.c.b16 %v448, %v446
    %v567 = vpack.c.b16 %v449, %v447
    %v568 = vpack.c.b16 %v452, %v450
    %v569 = vpack.c.b16 %v453, %v451
    %v570 = vpack.c.b16 %v456, %v454
    %v571 = vpack.c.b16 %v457, %v455
    %v572 = vpack.c.b16 %v460, %v458
    %v573 = vpack.c.b16 %v461, %v459
    %v574 = vpack.c.b16 %v464, %v462
    %v575 = vpack.c.b16 %v465, %v463
    %v576 = vpack.c.b16 %v468, %v466
    %v577 = vpack.c.b16 %v469, %v467
    %v578 = vpack.c.b16 %v472, %v470
    %v579 = vpack.c.b16 %v473, %v471
    %v580 = vpack.c.b16 %v476, %v474
    %v581 = vpack.c.b16 %v477, %v475
    %v582 = vpack.c.b16 %v480, %v478
    %v583 = vpack.c.b16 %v481, %v479
    %v584 = vpack.c.b16 %v484, %v482
    %v585 = vpack.c.b16 %v485, %v483
    %v586 = vpack.c.b16 %v488, %v486
    %v587 = vpack.c.b16 %v489, %v487
    %v588 = vpack.c.b16 %v492, %v490
    %v589 = vpack.c.b16 %v493, %v491
    %v590 = vpack.c.b16 %v496, %v494
    %v591 = vpack.c.b16 %v497, %v495
    %v592 = vpack.c.b16 %v500, %v498
    %v593 = vpack.c.b16 %v501, %v499
    %v594 = vpack.c.b16 %v504, %v502
    %v595 = vpack.c.b16 %v505, %v503
    %v596 = vpack.c.b16 %v508, %v506
    %v597 = vpack.c.b16 %v509, %v507
    %vm686 = vcmask 523264
    %v688 = vsel %vm686, %v240, 0
    %690 = vmatprep.subr.bf16.mxu0 %v511
    %691 = vmatpush1.bf16.msra.mxu0 %v510
    %692 = vmatprep.subr.bf16.mxu0 %v513
    %693 = vmatpush1.bf16.msra.mxu0 %v512
    %694 = vmatprep.subr.bf16.mxu0 %v515
    %695 = vmatpush1.bf16.msra.mxu0 %v514
    %696 = vmatprep.subr.bf16.mxu0 %v517
    %697 = vmatpush1.bf16.msra.mxu0 %v516
    %698 = vmatprep.subr.bf16.mxu0 %v519
    %699 = vmatpush1.bf16.msra.mxu0 %v518
    %700 = vmatprep.subr.bf16.mxu0 %v521
    %701 = vmatpush1.bf16.msra.mxu0 %v520
    %702 = vmatprep.subr.bf16.mxu0 %v523
    %703 = vmatpush1.bf16.msra.mxu0 %v522
    %704 = vmatprep.subr.bf16.mxu0 %v525
    %705 = vmatpush1.bf16.msra.mxu0 %v524
    %706 = vmatprep.subr.bf16.mxu0 %v527
    %707 = vmatpush1.bf16.msra.mxu0 %v526
    %708 = vmatprep.subr.bf16.mxu0 %v529
    %709 = vmatpush1.bf16.msra.mxu0 %v528
    %710 = vmatprep.subr.bf16.mxu0 %v531
    %711 = vmatpush1.bf16.msra.mxu0 %v530
    %712 = vmatprep.subr.bf16.mxu0 %v533
    %713 = vmatpush1.bf16.msra.mxu0 %v532
    %714 = vmatprep.subr.bf16.mxu0 %v535
    %715 = vmatpush1.bf16.msra.mxu0 %v534
    %716 = vmatprep.subr.bf16.mxu0 %v537
    %717 = vmatpush1.bf16.msra.mxu0 %v536
    %718 = vmatprep.subr.bf16.mxu0 %v539
    %719 = vmatpush1.bf16.msra.mxu0 %v538
    %720 = vmatprep.subr.bf16.mxu0 %v541
    %721 = vmatpush1.bf16.msra.mxu0 %v540
    %722 = vmatprep.mubr.bf16.mxu0 %v236
    %723 = vmatmul.mubr.bf16.gmra.mrb[0].mxu0 %v235
    %v724 = vpop.f32.mrb[0].mxu0
    %v725 = vadd.f32 %v213, %v724
    %v726 = vpop.f32.mrb[0].mxu0
    %v727 = vadd.f32 %v214, %v726
    %v728 = vpop.f32.mrb[0].mxu0
    %v729 = vadd.f32 %v215, %v728
    %v730 = vpop.f32.mrb[0].mxu0
    %v731 = vadd.f32 %v216, %v730
    %732 = vdwg.mxu0
    %733 = vmatprep.subr.bf16.mxu0 %v543
    %734 = vmatpush1.bf16.msra.mxu0 %v542
    %735 = vmatprep.subr.bf16.mxu0 %v545
    %736 = vmatpush1.bf16.msra.mxu0 %v544
    %737 = vmatprep.subr.bf16.mxu0 %v547
    %738 = vmatpush1.bf16.msra.mxu0 %v546
    %739 = vmatprep.subr.bf16.mxu0 %v549
    %740 = vmatpush1.bf16.msra.mxu0 %v548
    %741 = vmatprep.subr.bf16.mxu0 %v551
    %742 = vmatpush1.bf16.msra.mxu0 %v550
    %743 = vmatprep.subr.bf16.mxu0 %v553
    %744 = vmatpush1.bf16.msra.mxu0 %v552
    %745 = vmatprep.subr.bf16.mxu0 %v555
    %746 = vmatpush1.bf16.msra.mxu0 %v554
    %747 = vmatprep.subr.bf16.mxu0 %v557
    %748 = vmatpush1.bf16.msra.mxu0 %v556
    %749 = vmatprep.subr.bf16.mxu0 %v559
    %750 = vmatpush1.bf16.msra.mxu0 %v558
    %751 = vmatprep.subr.bf16.mxu0 %v561
    %752 = vmatpush1.bf16.msra.mxu0 %v560
    %753 = vmatprep.subr.bf16.mxu0 %v563
    %754 = vmatpush1.bf16.msra.mxu0 %v562
    %755 = vmatprep.subr.bf16.mxu0 %v565
    %756 = vmatpush1.bf16.msra.mxu0 %v564
    %757 = vmatprep.subr.bf16.mxu0 %v567
    %758 = vmatpush1.bf16.msra.mxu0 %v566
    %759 = vmatprep.subr.bf16.mxu0 %v569
    %760 = vmatpush1.bf16.msra.mxu0 %v568
    %761 = vmatprep.subr.bf16.mxu0 %v571
    %762 = vmatpush1.bf16.msra.mxu0 %v570
    %763 = vmatprep.subr.bf16.mxu0 %v573
    %764 = vmatpush1.bf16.msra.mxu0 %v572
    %765 = vmatprep.mubr.bf16.mxu0 %v238
    %766 = vmatmul.mubr.bf16.gmra.mrb[0].mxu0 %v237
    %v767 = vpop.f32.mrb[0].mxu0
    %v768 = vadd.f32 %v725, %v767
    %v769 = vpop.f32.mrb[0].mxu0
    %v770 = vadd.f32 %v727, %v769
    %v771 = vpop.f32.mrb[0].mxu0
    %v772 = vadd.f32 %v729, %v771
    %v773 = vpop.f32.mrb[0].mxu0
    %v774 = vadd.f32 %v731, %v773
    %775 = vdwg.mxu0
    %776 = vmatprep.subr.bf16.mxu0 %v575
    %777 = vmatpush1.bf16.msra.mxu0 %v574
    %778 = vmatprep.subr.bf16.mxu0 %v577
    %779 = vmatpush1.bf16.msra.mxu0 %v576
    %780 = vmatprep.subr.bf16.mxu0 %v579
    %781 = vmatpush1.bf16.msra.mxu0 %v578
    %782 = vmatprep.subr.bf16.mxu0 %v581
    %783 = vmatpush1.bf16.msra.mxu0 %v580
    %784 = vmatprep.subr.bf16.mxu0 %v583
    %785 = vmatpush1.bf16.msra.mxu0 %v582
    %786 = vmatprep.subr.bf16.mxu0 %v585
    %787 = vmatpush1.bf16.msra.mxu0 %v584
    %788 = vmatprep.subr.bf16.mxu0 %v587
    %789 = vmatpush1.bf16.msra.mxu0 %v586
    %790 = vmatprep.subr.bf16.mxu0 %v589
    %791 = vmatpush1.bf16.msra.mxu0 %v588
    %792 = vmatprep.subr.bf16.mxu0 %v591
    %793 = vmatpush1.bf16.msra.mxu0 %v590
    %794 = vmatprep.subr.bf16.mxu0 %v593
    %795 = vmatpush1.bf16.msra.mxu0 %v592
    %796 = vmatprep.subr.bf16.mxu0 %v595
    %797 = vmatpush1.bf16.msra.mxu0 %v594
    %798 = vmatprep.subr.bf16.mxu0 %v597
    %799 = vmatpush1.bf16.msra.mxu0 %v596
    %800 = vmatprep.subr.bf16.mxu0 0
    %801 = vmatpush1.bf16.msra.mxu0 0
    %802 = vmatprep.subr.bf16.mxu0 0
    %803 = vmatpush1.bf16.msra.mxu0 0
    %804 = vmatprep.subr.bf16.mxu0 0
    %805 = vmatpush1.bf16.msra.mxu0 0
    %806 = vmatprep.subr.bf16.mxu0 0
    %807 = vmatpush1.bf16.msra.mxu0 0
    %808 = vmatprep.mubr.bf16.mxu0 %v688
    %809 = vmatmul.mubr.bf16.gmra.mrb[0].mxu0 %v239
    %v810 = vpop.f32.mrb[0].mxu0
    %v811 = vadd.f32 %v768, %v810
    %v812 = vpop.f32.mrb[0].mxu0
    %v813 = vadd.f32 %v770, %v812
    %v814 = vpop.f32.mrb[0].mxu0
    %v815 = vadd.f32 %v772, %v814
    %v816 = vpop.f32.mrb[0].mxu0
    %v817 = vadd.f32 %v774, %v816
    %818 = vdwg.mxu0
    %v819 = vmax.f32 %v811, 0.0
    %v820 = vmax.f32 %v813, 0.0
    %v821 = vmax.f32 %v815, 0.0
    %v822 = vmax.f32 %v817, 0.0
    %v823 = vpack.c.bf16 %v821, %v819
    %v824 = vpack.c.bf16 %v822, %v820
    %v825 = vld [vmem:[#allocation7] sm:$0xff]
    %v826 = vld [vmem:[#allocation7 + $0x8] sm:$0xff]
    %v827 = vld [vmem:[#allocation7 + $0x10] sm:$0xff]
    %v828 = vld [vmem:[#allocation7 + $0x18] sm:$0xff]
    %v829 = vld [vmem:[#allocation7 + $0x20] sm:$0xff]
    %v830 = vld [vmem:[#allocation7 + $0x28] sm:$0xff]
    %v831 = vld [vmem:[#allocation7 + $0x30] sm:$0xff]
    %v832 = vld [vmem:[#allocation7 + $0x38] sm:$0xff]
    %v833 = vld [vmem:[#allocation7 + $0x40] sm:$0xff]
    %v834 = vld [vmem:[#allocation7 + $0x48] sm:$0xff]
    %v835 = vld [vmem:[#allocation7 + $0x50] sm:$0xff]
    %v836 = vld [vmem:[#allocation7 + $0x58] sm:$0xff]
    %v837 = vld [vmem:[#allocation7 + $0x60] sm:$0xff]
    %v838 = vld [vmem:[#allocation7 + $0x68] sm:$0xff]
    %v839 = vld [vmem:[#allocation7 + $0x70] sm:$0xff]
    %v840 = vld [vmem:[#allocation7 + $0x78] sm:$0xff]
    %v841 = vld [vmem:[#allocation7 + $0x80] sm:$0xff]
    %v842 = vld [vmem:[#allocation7 + $0x88] sm:$0xff]
    %v843 = vld [vmem:[#allocation7 + $0x90] sm:$0xff]
    %v844 = vld [vmem:[#allocation7 + $0x98] sm:$0xff]
    %v845 = vld [vmem:[#allocation7 + $0xa0] sm:$0xff]
    %v846 = vld [vmem:[#allocation7 + $0xa8] sm:$0xff]
    %v847 = vld [vmem:[#allocation7 + $0xb0] sm:$0xff]
    %v848 = vld [vmem:[#allocation7 + $0xb8] sm:$0xff]
    %v849 = vld [vmem:[#allocation7 + $0xc0] sm:$0xff]
    %v850 = vld [vmem:[#allocation7 + $0xc8] sm:$0xff]
    %v851 = vld [vmem:[#allocation7 + $0xd0] sm:$0xff]
    %v852 = vld [vmem:[#allocation7 + $0xd8] sm:$0xff]
    %v853 = vld [vmem:[#allocation7 + $0xe0] sm:$0xff]
    %v854 = vld [vmem:[#allocation7 + $0xe8] sm:$0xff]
    %v855 = vld [vmem:[#allocation7 + $0xf0] sm:$0xff]
    %v856 = vld [vmem:[#allocation7 + $0xf8] sm:$0xff]
    %v857 = vld [vmem:[%s5] sm:$0x3]
    %v859 = vlaneseq
    %v860 = vshrl.u32 %v859, 7
    %v861 = vsub.s32 0, %v860
    %v862 = vrot.slane %v857, %v861
    %v863 = vlaneseq
    %v864 = vshrl.u32 %v863, 7
    %v865 = vsub.s32 1, %v864
    %v866 = vrot.slane %v857, %v865
    %v901 = vunpack.c.l.b16 %v825
    %v902 = vunpack.c.h.b16 %v825
    %v903 = vunpack.c.l.b16 %v826
    %v904 = vunpack.c.h.b16 %v826
    %v905 = vunpack.c.l.b16 %v827
    %v906 = vunpack.c.h.b16 %v827
    %v907 = vunpack.c.l.b16 %v828
    %v908 = vunpack.c.h.b16 %v828
    %v909 = vunpack.c.l.b16 %v829
    %v910 = vunpack.c.h.b16 %v829
    %v911 = vunpack.c.l.b16 %v830
    %v912 = vunpack.c.h.b16 %v830
    %v913 = vunpack.c.l.b16 %v831
    %v914 = vunpack.c.h.b16 %v831
    %v915 = vunpack.c.l.b16 %v832
    %v916 = vunpack.c.h.b16 %v832
    %v917 = vunpack.c.l.b16 %v833
    %v918 = vunpack.c.h.b16 %v833
    %v919 = vunpack.c.l.b16 %v834
    %v920 = vunpack.c.h.b16 %v834
    %v921 = vunpack.c.l.b16 %v835
    %v922 = vunpack.c.h.b16 %v835
    %v923 = vunpack.c.l.b16 %v836
    %v924 = vunpack.c.h.b16 %v836
    %v925 = vunpack.c.l.b16 %v837
    %v926 = vunpack.c.h.b16 %v837
    %v927 = vunpack.c.l.b16 %v838
    %v928 = vunpack.c.h.b16 %v838
    %v929 = vunpack.c.l.b16 %v839
    %v930 = vunpack.c.h.b16 %v839
    %v931 = vunpack.c.l.b16 %v840
    %v932 = vunpack.c.h.b16 %v840
    %v933 = vunpack.c.l.b16 %v841
    %v934 = vunpack.c.h.b16 %v841
    %v935 = vunpack.c.l.b16 %v842
    %v936 = vunpack.c.h.b16 %v842
    %v937 = vunpack.c.l.b16 %v843
    %v938 = vunpack.c.h.b16 %v843
    %v939 = vunpack.c.l.b16 %v844
    %v940 = vunpack.c.h.b16 %v844
    %v941 = vunpack.c.l.b16 %v845
    %v942 = vunpack.c.h.b16 %v845
    %v943 = vunpack.c.l.b16 %v846
    %v944 = vunpack.c.h.b16 %v846
    %v945 = vunpack.c.l.b16 %v847
    %v946 = vunpack.c.h.b16 %v847
    %v947 = vunpack.c.l.b16 %v848
    %v948 = vunpack.c.h.b16 %v848
    %v949 = vunpack.c.l.b16 %v849
    %v950 = vunpack.c.h.b16 %v849
    %v951 = vunpack.c.l.b16 %v850
    %v952 = vunpack.c.h.b16 %v850
    %v953 = vunpack.c.l.b16 %v851
    %v954 = vunpack.c.h.b16 %v851
    %v955 = vunpack.c.l.b16 %v852
    %v956 = vunpack.c.h.b16 %v852
    %v957 = vunpack.c.l.b16 %v853
    %v958 = vunpack.c.h.b16 %v853
    %v959 = vunpack.c.l.b16 %v854
    %v960 = vunpack.c.h.b16 %v854
    %v961 = vunpack.c.l.b16 %v855
    %v962 = vunpack.c.h.b16 %v855
    %v963 = vunpack.c.l.b16 %v856
    %v964 = vunpack.c.h.b16 %v856
    %v965 = vpack.c.b16 %v903, %v901
    %v966 = vpack.c.b16 %v904, %v902
    %v967 = vpack.c.b16 %v907, %v905
    %v968 = vpack.c.b16 %v908, %v906
    %v969 = vpack.c.b16 %v911, %v909
    %v970 = vpack.c.b16 %v912, %v910
    %v971 = vpack.c.b16 %v915, %v913
    %v972 = vpack.c.b16 %v916, %v914
    %v973 = vpack.c.b16 %v919, %v917
    %v974 = vpack.c.b16 %v920, %v918
    %v975 = vpack.c.b16 %v923, %v921
    %v976 = vpack.c.b16 %v924, %v922
    %v977 = vpack.c.b16 %v927, %v925
    %v978 = vpack.c.b16 %v928, %v926
    %v979 = vpack.c.b16 %v931, %v929
    %v980 = vpack.c.b16 %v932, %v930
    %v981 = vpack.c.b16 %v935, %v933
    %v982 = vpack.c.b16 %v936, %v934
    %v983 = vpack.c.b16 %v939, %v937
    %v984 = vpack.c.b16 %v940, %v938
    %v985 = vpack.c.b16 %v943, %v941
    %v986 = vpack.c.b16 %v944, %v942
    %v987 = vpack.c.b16 %v947, %v945
    %v988 = vpack.c.b16 %v948, %v946
    %v989 = vpack.c.b16 %v951, %v949
    %v990 = vpack.c.b16 %v952, %v950
    %v991 = vpack.c.b16 %v955, %v953
    %v992 = vpack.c.b16 %v956, %v954
    %v993 = vpack.c.b16 %v959, %v957
    %v994 = vpack.c.b16 %v960, %v958
    %v995 = vpack.c.b16 %v963, %v961
    %v996 = vpack.c.b16 %v964, %v962
    %1029 = vmatprep.subr.bf16.mxu0 %v966
    %1030 = vmatpush1.bf16.msra.mxu0 %v965
    %1031 = vmatprep.subr.bf16.mxu0 %v968
    %1032 = vmatpush1.bf16.msra.mxu0 %v967
    %1033 = vmatprep.subr.bf16.mxu0 %v970
    %1034 = vmatpush1.bf16.msra.mxu0 %v969
    %1035 = vmatprep.subr.bf16.mxu0 %v972
    %1036 = vmatpush1.bf16.msra.mxu0 %v971
    %1037 = vmatprep.subr.bf16.mxu0 %v974
    %1038 = vmatpush1.bf16.msra.mxu0 %v973
    %1039 = vmatprep.subr.bf16.mxu0 %v976
    %1040 = vmatpush1.bf16.msra.mxu0 %v975
    %1041 = vmatprep.subr.bf16.mxu0 %v978
    %1042 = vmatpush1.bf16.msra.mxu0 %v977
    %1043 = vmatprep.subr.bf16.mxu0 %v980
    %1044 = vmatpush1.bf16.msra.mxu0 %v979
    %1045 = vmatprep.subr.bf16.mxu0 %v982
    %1046 = vmatpush1.bf16.msra.mxu0 %v981
    %1047 = vmatprep.subr.bf16.mxu0 %v984
    %1048 = vmatpush1.bf16.msra.mxu0 %v983
    %1049 = vmatprep.subr.bf16.mxu0 %v986
    %1050 = vmatpush1.bf16.msra.mxu0 %v985
    %1051 = vmatprep.subr.bf16.mxu0 %v988
    %1052 = vmatpush1.bf16.msra.mxu0 %v987
    %1053 = vmatprep.subr.bf16.mxu0 %v990
    %1054 = vmatpush1.bf16.msra.mxu0 %v989
    %1055 = vmatprep.subr.bf16.mxu0 %v992
    %1056 = vmatpush1.bf16.msra.mxu0 %v991
    %1057 = vmatprep.subr.bf16.mxu0 %v994
    %1058 = vmatpush1.bf16.msra.mxu0 %v993
    %1059 = vmatprep.subr.bf16.mxu0 %v996
    %1060 = vmatpush1.bf16.msra.mxu0 %v995
    %1061 = vmatprep.mubr.bf16.mxu0 %v824
    %1062 = vmatmul.mubr.bf16.gmra.mrb[0].mxu0 %v823
    %v1063 = vpop.f32.mrb[0].mxu0
    %v1064 = vadd.f32 %v862, %v1063
    %v1065 = vpop.f32.mrb[0].mxu0
    %v1066 = vadd.f32 %v866, %v1065
    %v1067 = vpop.f32.mrb[0].mxu0
    %v1068 = vadd.f32 %v862, %v1067
    %v1069 = vpop.f32.mrb[0].mxu0
    %v1070 = vadd.f32 %v866, %v1069
    %1071 = vdwg.mxu0
    %v1072 = vmax.f32 %v1064, 0.0
    %v1073 = vmax.f32 %v1066, 0.0
    %v1074 = vmax.f32 %v1068, 0.0
    %v1075 = vmax.f32 %v1070, 0.0
    %v1076 = vpack.c.bf16 %v1074, %v1072
    %v1077 = vpack.c.bf16 %v1075, %v1073
    %v1078 = vld [vmem:[#allocation8] sm:$0xf]
    %v1079 = vld [vmem:[#allocation8 + $0x4] sm:$0xf]
    %v1080 = vld [vmem:[#allocation8 + $0x8] sm:$0xf]
    %v1081 = vld [vmem:[#allocation8 + $0xc] sm:$0xf]
    %v1082 = vld [vmem:[#allocation8 + $0x10] sm:$0xf]
    %v1083 = vld [vmem:[#allocation8 + $0x14] sm:$0xf]
    %v1084 = vld [vmem:[#allocation8 + $0x18] sm:$0xf]
    %v1085 = vld [vmem:[#allocation8 + $0x1c] sm:$0xf]
    %v1086 = vld [vmem:[#allocation8 + $0x20] sm:$0xf]
    %v1087 = vld [vmem:[#allocation8 + $0x24] sm:$0xf]
    %v1088 = vld [vmem:[#allocation8 + $0x28] sm:$0xf]
    %v1089 = vld [vmem:[#allocation8 + $0x2c] sm:$0xf]
    %v1090 = vld [vmem:[#allocation8 + $0x30] sm:$0xf]
    %v1091 = vld [vmem:[#allocation8 + $0x34] sm:$0xf]
    %v1092 = vld [vmem:[#allocation8 + $0x38] sm:$0xf]
    %v1093 = vld [vmem:[#allocation8 + $0x3c] sm:$0xf]
    %v1094 = vld [vmem:[#allocation8 + $0x40] sm:$0xf]
    %v1095 = vld [vmem:[#allocation8 + $0x44] sm:$0xf]
    %v1096 = vld [vmem:[#allocation8 + $0x48] sm:$0xf]
    %v1097 = vld [vmem:[#allocation8 + $0x4c] sm:$0xf]
    %v1098 = vld [vmem:[#allocation8 + $0x50] sm:$0xf]
    %v1099 = vld [vmem:[#allocation8 + $0x54] sm:$0xf]
    %v1100 = vld [vmem:[#allocation8 + $0x58] sm:$0xf]
    %v1101 = vld [vmem:[#allocation8 + $0x5c] sm:$0xf]
    %v1102 = vld [vmem:[#allocation8 + $0x60] sm:$0xf]
    %v1103 = vld [vmem:[#allocation8 + $0x64] sm:$0xf]
    %v1104 = vld [vmem:[#allocation8 + $0x68] sm:$0xf]
    %v1105 = vld [vmem:[#allocation8 + $0x6c] sm:$0xf]
    %v1106 = vld [vmem:[#allocation8 + $0x70] sm:$0xf]
    %v1107 = vld [vmem:[#allocation8 + $0x74] sm:$0xf]
    %v1108 = vld [vmem:[#allocation8 + $0x78] sm:$0xf]
    %v1109 = vld [vmem:[#allocation8 + $0x7c] sm:$0xf]
    %v1110 = vld [vmem:[%s7] sm:$0x1]
    %v1112 = vlaneseq
    %v1113 = vshrl.u32 %v1112, 7
    %v1114 = vsub.s32 0, %v1113
    %v1115 = vrot.slane %v1110, %v1114
    %v1149 = vunpack.c.l.b16 %v1078
    %v1150 = vunpack.c.l.b16 %v1079
    %v1151 = vunpack.c.l.b16 %v1080
    %v1152 = vunpack.c.l.b16 %v1081
    %v1153 = vunpack.c.l.b16 %v1082
    %v1154 = vunpack.c.l.b16 %v1083
    %v1155 = vunpack.c.l.b16 %v1084
    %v1156 = vunpack.c.l.b16 %v1085
    %v1157 = vunpack.c.l.b16 %v1086
    %v1158 = vunpack.c.l.b16 %v1087
    %v1159 = vunpack.c.l.b16 %v1088
    %v1160 = vunpack.c.l.b16 %v1089
    %v1161 = vunpack.c.l.b16 %v1090
    %v1162 = vunpack.c.l.b16 %v1091
    %v1163 = vunpack.c.l.b16 %v1092
    %v1164 = vunpack.c.l.b16 %v1093
    %v1165 = vunpack.c.l.b16 %v1094
    %v1166 = vunpack.c.l.b16 %v1095
    %v1167 = vunpack.c.l.b16 %v1096
    %v1168 = vunpack.c.l.b16 %v1097
    %v1169 = vunpack.c.l.b16 %v1098
    %v1170 = vunpack.c.l.b16 %v1099
    %v1171 = vunpack.c.l.b16 %v1100
    %v1172 = vunpack.c.l.b16 %v1101
    %v1173 = vunpack.c.l.b16 %v1102
    %v1174 = vunpack.c.l.b16 %v1103
    %v1175 = vunpack.c.l.b16 %v1104
    %v1176 = vunpack.c.l.b16 %v1105
    %v1177 = vunpack.c.l.b16 %v1106
    %v1178 = vunpack.c.l.b16 %v1107
    %v1179 = vunpack.c.l.b16 %v1108
    %v1180 = vunpack.c.l.b16 %v1109
    %v1181 = vpack.c.b16 %v1150, %v1149
    %v1182 = vpack.c.b16 %v1152, %v1151
    %v1183 = vpack.c.b16 %v1154, %v1153
    %v1184 = vpack.c.b16 %v1156, %v1155
    %v1185 = vpack.c.b16 %v1158, %v1157
    %v1186 = vpack.c.b16 %v1160, %v1159
    %v1187 = vpack.c.b16 %v1162, %v1161
    %v1188 = vpack.c.b16 %v1164, %v1163
    %v1189 = vpack.c.b16 %v1166, %v1165
    %v1190 = vpack.c.b16 %v1168, %v1167
    %v1191 = vpack.c.b16 %v1170, %v1169
    %v1192 = vpack.c.b16 %v1172, %v1171
    %v1193 = vpack.c.b16 %v1174, %v1173
    %v1194 = vpack.c.b16 %v1176, %v1175
    %v1195 = vpack.c.b16 %v1178, %v1177
    %v1196 = vpack.c.b16 %v1180, %v1179
    %1213 = vmatprep.subr.bf16.mxu0 0
    %1214 = vmatpush1.bf16.msra.mxu0 %v1181
    %1215 = vmatprep.subr.bf16.mxu0 0
    %1216 = vmatpush1.bf16.msra.mxu0 %v1182
    %1217 = vmatprep.subr.bf16.mxu0 0
    %1218 = vmatpush1.bf16.msra.mxu0 %v1183
    %1219 = vmatprep.subr.bf16.mxu0 0
    %1220 = vmatpush1.bf16.msra.mxu0 %v1184
    %1221 = vmatprep.subr.bf16.mxu0 0
    %1222 = vmatpush1.bf16.msra.mxu0 %v1185
    %1223 = vmatprep.subr.bf16.mxu0 0
    %1224 = vmatpush1.bf16.msra.mxu0 %v1186
    %1225 = vmatprep.subr.bf16.mxu0 0
    %1226 = vmatpush1.bf16.msra.mxu0 %v1187
    %1227 = vmatprep.subr.bf16.mxu0 0
    %1228 = vmatpush1.bf16.msra.mxu0 %v1188
    %1229 = vmatprep.subr.bf16.mxu0 0
    %1230 = vmatpush1.bf16.msra.mxu0 %v1189
    %1231 = vmatprep.subr.bf16.mxu0 0
    %1232 = vmatpush1.bf16.msra.mxu0 %v1190
    %1233 = vmatprep.subr.bf16.mxu0 0
    %1234 = vmatpush1.bf16.msra.mxu0 %v1191
    %1235 = vmatprep.subr.bf16.mxu0 0
    %1236 = vmatpush1.bf16.msra.mxu0 %v1192
    %1237 = vmatprep.subr.bf16.mxu0 0
    %1238 = vmatpush1.bf16.msra.mxu0 %v1193
    %1239 = vmatprep.subr.bf16.mxu0 0
    %1240 = vmatpush1.bf16.msra.mxu0 %v1194
    %1241 = vmatprep.subr.bf16.mxu0 0
    %1242 = vmatpush1.bf16.msra.mxu0 %v1195
    %1243 = vmatprep.subr.bf16.mxu0 0
    %1244 = vmatpush1.bf16.msra.mxu0 %v1196
    %1245 = vmatprep.mubr.bf16.mxu0 %v1077
    %1246 = vmatmul.mubr.bf16.gmra.mrb[0].mxu0 %v1076
    %v1247 = vpop.f32.mrb[0].mxu0
    %v1248 = vadd.f32 %v1115, %v1247
    %v1249 = vpop.f32.mrb[0].mxu0
    %v1250 = vpop.f32.mrb[0].mxu0
    %v1251 = vadd.f32 %v1115, %v1250
    %v1252 = vpop.f32.mrb[0].mxu0
    %1253 = vdwg.mxu0
    %1254 = vst [vmem:[#allocation10] sm:$0xff] %v1248
    %1255 = vst [vmem:[#allocation10 + $0x8] sm:$0xff] %v1251
    // Predicated region
    $region50: #{tpu_custom_call.1} parent=1 // pred_check
      _
    $region51: #{tpu_custom_call.1} parent=1 // pred_check_branch
      %1257 = sbr.rel (0) target = $region53
    $region52: #{tpu_custom_call.1} parent=1 // pred_region
      %s1259 = ssub.s32 256, 256
      %1260 = vsyncadd [#allocation4], %s1259
      %s1261 = sshll.u32 [#allocation10], 4
      %s1262 = int_to_ptr.vmem [resolvable:$true] %s1261
      %1267 = dma.vmem_to_hbm [thread:$0]  %s1262, 256, %s8, [#allocation4], 128, 128, 8
    $region53: #{tpu_custom_call.1} parent=1 // pred_fallthru
      _
    // Predicated region
    $region54: #{tpu_custom_call.1} parent=1 // pred_check
      _
    $region55: #{tpu_custom_call.1} parent=1 // pred_check_branch
      %1269 = sbr.rel (0) target = $region57
    $region56: #{tpu_custom_call.1} parent=1 // pred_region
      %1270 = dma.done [#allocation4], 256
    $region57: #{tpu_custom_call.1} parent=1 // pred_fallthru
      _
    %1271 = vsyncpa [#allocation3], 1
    %1272 = vsyncpa [#allocation6], 1
    %1273 = vsyncpa [#allocation9], 1
    %1274 = vsyncpa [#allocation4], 1

</llo_original>
